<compile_context>
chip_gen: v5e
topology: v5e:2x2
jax: 0.10.0
libtpu: 0.0.40
codegen_flags: <defaults>
</compile_context>

<pallas_src>
import jax
import jax.numpy as jnp
from jax.experimental import pallas as pl
from jax.experimental.pallas import tpu as pltpu

EPS = 1e-5
NEG_SLOPE = 0.1
LANE = 128


def _round_up(x, m):
    return ((x + m - 1) // m) * m


# ---------------------------------------------------------------------------
# Pass 1: conv-as-matmul (bf16 in, f32 acc) + per-channel sum / sum-of-squares
# for training-mode BatchNorm statistics.
#   grid = (num_m_tiles, num_k_tiles); K is the last ("arbitrary") axis.
#   y_ref (f32 conv output tile, resident across K) is the K accumulator.
#   sum_ref / ssq_ref have a constant block index -> resident across the whole
#   grid and written back once at the end.
# ---------------------------------------------------------------------------
def _conv_stats_kernel(p_ref, w_ref, y_ref, sum_ref, ssq_ref):
    m_i = pl.program_id(0)
    k_i = pl.program_id(1)
    nk = pl.num_programs(1)

    @pl.when(k_i == 0)
    def _():
        y_ref[...] = jnp.zeros_like(y_ref)

    y_ref[...] += jnp.dot(p_ref[...], w_ref[...],
                          preferred_element_type=jnp.float32)

    @pl.when(k_i == nk - 1)
    def _():
        y = y_ref[...]
        s = jnp.sum(y, axis=0, keepdims=True)
        ss = jnp.sum(y * y, axis=0, keepdims=True)

        @pl.when(m_i == 0)
        def _():
            sum_ref[...] = s
            ssq_ref[...] = ss

        @pl.when(m_i > 0)
        def _():
            sum_ref[...] += s
            ssq_ref[...] += ss


# ---------------------------------------------------------------------------
# Pass 2: y * scale + bias, then LeakyReLU(0.1).  scale/bias already fold the
# BN mean / rsqrt(var+eps) / gamma / beta, so this is pure elementwise and the
# M axis is "parallel".
# ---------------------------------------------------------------------------
def _bn_lrelu_kernel(y_ref, scale_ref, bias_ref, out_ref):
    z = y_ref[...] * scale_ref[...] + bias_ref[...]
    out_ref[...] = jnp.where(z > 0, z, NEG_SLOPE * z)


def cnn_block_forward(x_nchw, weight_oihw, gamma, beta, *,
                      stride=1, padding=1, tm=512, tk=512):
    """Matches CNNBlock(in_c, out_c, kernel_size=kh, stride=stride, padding=padding)."""
    N, Cin, H, W = x_nchw.shape
    Cout, Cin_w, kh, kw = weight_oihw.shape
    assert Cin_w == Cin

    Ho = (H + 2 * padding - kh) // stride + 1
    Wo = (W + 2 * padding - kw) // stride + 1
    M = N * Ho * Wo
    K = kh * kw * Cin

    # Lane-dense output channels, 128-aligned contraction tiles, 8-aligned M tiles.
    c_pad = _round_up(Cout, LANE)
    tk = max(LANE, min(_round_up(tk, LANE), _round_up(K, LANE)))
    k_pad = _round_up(K, tk)
    tm = max(8, min(_round_up(tm, 8), _round_up(M, 8)))
    m_pad = _round_up(M, tm)
    n_m = m_pad // tm
    n_k = k_pad // tk

    # NCHW -> NHWC in bf16 (MXU operand dtype; halves im2col HBM traffic).
    x = jnp.transpose(x_nchw, (0, 2, 3, 1)).astype(jnp.bfloat16)
    xp = jnp.pad(x, ((0, 0), (padding, padding), (padding, padding), (0, 0)))

    # im2col, feature ordering (ki, kj, cin).
    patch_slices = []
    for i in range(kh):
        for j in range(kw):
            patch_slices.append(
                xp[:, i:i + stride * Ho:stride, j:j + stride * Wo:stride, :])
    patches = jnp.concatenate(patch_slices, axis=-1)            # (N, Ho, Wo, K)
    patches2d = patches.reshape(M, K)
    patches2d = jnp.pad(patches2d, ((0, m_pad - M), (0, k_pad - K)))

    # PyTorch OIHW -> (kh, kw, Cin, Cout) -> (K, Cout), matching patch ordering.
    w2d = jnp.transpose(weight_oihw, (2, 3, 1, 0)).reshape(K, Cout)
    w2d = jnp.pad(w2d, ((0, k_pad - K), (0, c_pad - Cout))).astype(jnp.bfloat16)

    y2d, csum, cssq = pl.pallas_call(
        _conv_stats_kernel,
        out_shape=(
            jax.ShapeDtypeStruct((m_pad, c_pad), jnp.float32),   # conv output
            jax.ShapeDtypeStruct((1, c_pad), jnp.float32),       # per-ch sum
            jax.ShapeDtypeStruct((1, c_pad), jnp.float32),       # per-ch sum of sq
        ),
        grid=(n_m, n_k),
        in_specs=[
            pl.BlockSpec((tm, tk), lambda m, k: (m, k)),
            pl.BlockSpec((tk, c_pad), lambda m, k: (k, 0)),
        ],
        out_specs=(
            pl.BlockSpec((tm, c_pad), lambda m, k: (m, 0)),
            pl.BlockSpec((1, c_pad), lambda m, k: (0, 0)),
            pl.BlockSpec((1, c_pad), lambda m, k: (0, 0)),
        ),
        compiler_params=pltpu.CompilerParams(
            dimension_semantics=("arbitrary", "arbitrary"),
            vmem_limit_bytes=32 * 1024 * 1024),
    )(patches2d, w2d)

    # BatchNorm2d training-mode statistics over the *true* M rows (padded rows
    # are all-zero and contribute nothing to sum / sum-of-squares).
    mean = csum / M
    var = jnp.maximum(cssq / M - mean * mean, 0.0)               # biased variance
    rstd = jax.lax.rsqrt(var + EPS)
    g = jnp.pad(gamma.astype(jnp.float32).reshape(1, Cout),
                ((0, 0), (0, c_pad - Cout)))
    b = jnp.pad(beta.astype(jnp.float32).reshape(1, Cout),
                ((0, 0), (0, c_pad - Cout)))
    scale = g * rstd
    bias = b - mean * scale

    out2d = pl.pallas_call(
        _bn_lrelu_kernel,
        out_shape=jax.ShapeDtypeStruct((m_pad, c_pad), jnp.float32),
        grid=(n_m,),
        in_specs=[
            pl.BlockSpec((tm, c_pad), lambda m: (m, 0)),
            pl.BlockSpec((1, c_pad), lambda m: (0, 0)),
            pl.BlockSpec((1, c_pad), lambda m: (0, 0)),
        ],
        out_specs=pl.BlockSpec((tm, c_pad), lambda m: (m, 0)),
        compiler_params=pltpu.CompilerParams(
            dimension_semantics=("parallel",),
            vmem_limit_bytes=32 * 1024 * 1024),
    )(y2d, scale, bias)

    out = out2d[:M, :Cout].reshape(N, Ho, Wo, Cout)
    # NCHW output only because the PyTorch module contract is NCHW; a NHWC
    # network should consume `out` directly and skip this transpose.
    return jnp.transpose(out, (0, 3, 1, 2))


def _reference_forward(x, w, gamma, beta, *, stride=1, padding=1):
    """Pure-JAX reference (PyTorch semantics, training-mode BN)."""
    y = jax.lax.conv_general_dilated(
        x.astype(jnp.float32), w.astype(jnp.float32),
        window_strides=(stride, stride),
        padding=((padding, padding), (padding, padding)),
        dimension_numbers=("NCHW", "OIHW", "NCHW"),
    )
    mean = jnp.mean(y, axis=(0, 2, 3), keepdims=True)
    var = jnp.mean(jnp.square(y - mean), axis=(0, 2, 3), keepdims=True)
    yn = (y - mean) / jnp.sqrt(var + EPS)
    yn = yn * gamma.reshape(1, -1, 1, 1) + beta.reshape(1, -1, 1, 1)
    return jnp.where(yn > 0, yn, NEG_SLOPE * yn)


if __name__ == "__main__":
    # CNNBlock(in_channels=4, out_channels=8, kernel_size=3, stride=1, padding=1)
    # on a (2, 4, 16, 16) NCHW input.
    N, Cin, H, W = 2, 4, 16, 16
    Cout, kh, kw = 8, 3, 3

    key = jax.random.PRNGKey(0)
    kx, kw_key = jax.random.split(key)
    x = jax.random.normal(kx, (N, Cin, H, W), dtype=jnp.float32)
    weight = 0.1 * jax.random.normal(kw_key, (Cout, Cin, kh, kw), dtype=jnp.float32)
    gamma = jnp.ones((Cout,), dtype=jnp.float32)
    beta = jnp.zeros((Cout,), dtype=jnp.float32)

    # tm=128 so the 512-row problem runs 4 M-tiles and exercises the
    # cross-tile BatchNorm statistics accumulation.
    out = cnn_block_forward(x, weight, gamma, beta, stride=1, padding=1,
                            tm=128, tk=128)
    out = jax.block_until_ready(out)
    assert out.shape == (N, Cout, H, W)

    # Tight check vs a reference whose conv operands see the same bf16
    # quantization (MXU accumulates in f32, so only reduction order differs).
    x_q = x.astype(jnp.bfloat16).astype(jnp.float32)
    w_q = weight.astype(jnp.bfloat16).astype(jnp.float32)
    ref_q = jax.block_until_ready(_reference_forward(x_q, w_q, gamma, beta))
    assert jnp.allclose(out, ref_q, atol=2e-3, rtol=2e-3), \
        "mismatch vs bf16-quantized reference"

    # Loose sanity check vs the pure-f32 PyTorch-semantics reference
    # (bf16 MXU operands -> small, bounded deviation).
    ref = jax.block_until_ready(_reference_forward(x, weight, gamma, beta))
    assert jnp.allclose(out, ref, atol=5e-2, rtol=5e-2), "mismatch vs f32 reference"

    print("KERNEL_OK")
</pallas_src>

<mosaic_0001>
module attributes {stable_mosaic.version = 11 : i64} {
  func.func @_conv_stats_kernel(%arg0: i32, %arg1: i32, %arg2: memref<128x128xbf16, #tpu.memory_space<vmem>>, %arg3: memref<128x128xbf16, #tpu.memory_space<vmem>>, %arg4: memref<128x128xf32, #tpu.memory_space<vmem>>, %arg5: memref<1x128xf32, #tpu.memory_space<vmem>>, %arg6: memref<1x128xf32, #tpu.memory_space<vmem>>) attributes {dimension_semantics = [#tpu.dimension_semantics<arbitrary>, #tpu.dimension_semantics<arbitrary>], iteration_bounds = array<i64: 4, 1>, scalar_prefetch = 0 : i64, scratch_operands = 0 : i64, tpu.core_type = #tpu.core_type<tc>, window_params = [{transform_indices = @transform_0, window_bounds = array<i64: 128, 128>}, {transform_indices = @transform_1, window_bounds = array<i64: 128, 128>}, {transform_indices = @transform_2, window_bounds = array<i64: 128, 128>}, {pipeline_mode = #tpu.pipeline_mode<synchronous>, transform_indices = @transform_3, window_bounds = array<i64: 1, 128>}, {pipeline_mode = #tpu.pipeline_mode<synchronous>, transform_indices = @transform_4, window_bounds = array<i64: 1, 128>}]} {
    %c0_i32 = arith.constant 0 : i32
    %0 = arith.cmpi eq, %arg1, %c0_i32 : i32
    %1 = arith.extui %0 : i1 to i32
    %c0_i32_0 = arith.constant 0 : i32
    %2 = arith.cmpi ne, %1, %c0_i32_0 : i32
    scf.if %2 {
      %cst_10 = arith.constant 0.000000e+00 : f32
      %12 = vector.broadcast %cst_10 : f32 to vector<128x128xf32>
      %c0_11 = arith.constant 0 : index
      %c0_12 = arith.constant 0 : index
      %13 = vector.load %arg4[%c0_11, %c0_12] : memref<128x128xf32, #tpu.memory_space<vmem>>, vector<128x128xf32>
      tpu.vector_store %arg4[%c0_11, %c0_12], %12 {strides = array<i32>} : memref<128x128xf32, #tpu.memory_space<vmem>>, vector<128x128xf32>,
    } else {
    }
    %c0 = arith.constant 0 : index
    %c0_1 = arith.constant 0 : index
    %3 = vector.load %arg4[%c0, %c0_1] : memref<128x128xf32, #tpu.memory_space<vmem>>, vector<128x128xf32>
    %c0_2 = arith.constant 0 : index
    %c0_3 = arith.constant 0 : index
    %4 = vector.load %arg2[%c0_2, %c0_3] : memref<128x128xbf16, #tpu.memory_space<vmem>>, vector<128x128xbf16>
    %c0_4 = arith.constant 0 : index
    %c0_5 = arith.constant 0 : index
    %5 = vector.load %arg3[%c0_4, %c0_5] : memref<128x128xbf16, #tpu.memory_space<vmem>>, vector<128x128xbf16>
    %cst = arith.constant dense<0.000000e+00> : vector<128x128xf32>
    %6 = tpu.matmul %4, %5, %cst {dimension_numbers = #tpu.dot_dimension_numbers<[1], [0], [0], [1], [0, 0, 1, 1], [], []>} : vector<128x128xbf16>, vector<128x128xbf16>, vector<128x128xf32> -> vector<128x128xf32>
    %7 = arith.addf %3, %6 : vector<128x128xf32>
    %c0_6 = arith.constant 0 : index
    %c0_7 = arith.constant 0 : index
    %8 = vector.load %arg4[%c0_6, %c0_7] : memref<128x128xf32, #tpu.memory_space<vmem>>, vector<128x128xf32>
    tpu.vector_store %arg4[%c0_6, %c0_7], %7 {strides = array<i32>} : memref<128x128xf32, #tpu.memory_space<vmem>>, vector<128x128xf32>,
    %c0_i32_8 = arith.constant 0 : i32
    %9 = arith.cmpi eq, %arg1, %c0_i32_8 : i32
    %10 = arith.extui %9 : i1 to i32
    %c0_i32_9 = arith.constant 0 : i32
    %11 = arith.cmpi ne, %10, %c0_i32_9 : i32
    scf.if %11 {
      %c0_10 = arith.constant 0 : index
      %c0_11 = arith.constant 0 : index
      %12 = vector.load %arg4[%c0_10, %c0_11] : memref<128x128xf32, #tpu.memory_space<vmem>>, vector<128x128xf32>
      %cst_12 = arith.constant dense<0.000000e+00> : vector<128xf32>
      %13 = vector.multi_reduction <add>, %12, %cst_12 [0] : vector<128x128xf32> to vector<128xf32>
      %14 = vector.shape_cast %13 : vector<128xf32> to vector<1x128xf32>
      %15 = arith.mulf %12, %12 : vector<128x128xf32>
      %cst_13 = arith.constant dense<0.000000e+00> : vector<128xf32>
      %16 = vector.multi_reduction <add>, %15, %cst_13 [0] : vector<128x128xf32> to vector<128xf32>
      %17 = vector.shape_cast %16 : vector<128xf32> to vector<1x128xf32>
      %c0_i32_14 = arith.constant 0 : i32
      %18 = arith.cmpi eq, %arg0, %c0_i32_14 : i32
      %19 = arith.extui %18 : i1 to i32
      %c0_i32_15 = arith.constant 0 : i32
      %20 = arith.cmpi ne, %19, %c0_i32_15 : i32
      scf.if %20 {
        %c0_18 = arith.constant 0 : index
        %c0_19 = arith.constant 0 : index
        %24 = vector.load %arg5[%c0_18, %c0_19] : memref<1x128xf32, #tpu.memory_space<vmem>>, vector<1x128xf32>
        tpu.vector_store %arg5[%c0_18, %c0_19], %14 {strides = array<i32>} : memref<1x128xf32, #tpu.memory_space<vmem>>, vector<1x128xf32>,
        %c0_20 = arith.constant 0 : index
        %c0_21 = arith.constant 0 : index
        %25 = vector.load %arg6[%c0_20, %c0_21] : memref<1x128xf32, #tpu.memory_space<vmem>>, vector<1x128xf32>
        tpu.vector_store %arg6[%c0_20, %c0_21], %17 {strides = array<i32>} : memref<1x128xf32, #tpu.memory_space<vmem>>, vector<1x128xf32>,
      } else {
      }
      %c0_i32_16 = arith.constant 0 : i32
      %21 = arith.cmpi sgt, %arg0, %c0_i32_16 : i32
      %22 = arith.extui %21 : i1 to i32
      %c0_i32_17 = arith.constant 0 : i32
      %23 = arith.cmpi ne, %22, %c0_i32_17 : i32
      scf.if %23 {
        %c0_18 = arith.constant 0 : index
        %c0_19 = arith.constant 0 : index
        %24 = vector.load %arg5[%c0_18, %c0_19] : memref<1x128xf32, #tpu.memory_space<vmem>>, vector<1x128xf32>
        %25 = arith.addf %24, %14 : vector<1x128xf32>
        %c0_20 = arith.constant 0 : index
        %c0_21 = arith.constant 0 : index
        %26 = vector.load %arg5[%c0_20, %c0_21] : memref<1x128xf32, #tpu.memory_space<vmem>>, vector<1x128xf32>
        tpu.vector_store %arg5[%c0_20, %c0_21], %25 {strides = array<i32>} : memref<1x128xf32, #tpu.memory_space<vmem>>, vector<1x128xf32>,
        %c0_22 = arith.constant 0 : index
        %c0_23 = arith.constant 0 : index
        %27 = vector.load %arg6[%c0_22, %c0_23] : memref<1x128xf32, #tpu.memory_space<vmem>>, vector<1x128xf32>
        %28 = arith.addf %27, %17 : vector<1x128xf32>
        %c0_24 = arith.constant 0 : index
        %c0_25 = arith.constant 0 : index
        %29 = vector.load %arg6[%c0_24, %c0_25] : memref<1x128xf32, #tpu.memory_space<vmem>>, vector<1x128xf32>
        tpu.vector_store %arg6[%c0_24, %c0_25], %28 {strides = array<i32>} : memref<1x128xf32, #tpu.memory_space<vmem>>, vector<1x128xf32>,
      } else {
      }
    } else {
    }
    return
  }
  func.func @transform_0(%arg0: i32, %arg1: i32) -> (i32, i32) {
    %c0_i32 = arith.constant 0 : i32
    return %arg0, %arg1 : i32, i32
  }
  func.func @transform_1(%arg0: i32, %arg1: i32) -> (i32, i32) {
    %c0_i32 = arith.constant 0 : i32
    %c0_i32_0 = arith.constant 0 : i32
    return %arg1, %c0_i32 : i32, i32
  }
  func.func @transform_2(%arg0: i32, %arg1: i32) -> (i32, i32) {
    %c0_i32 = arith.constant 0 : i32
    %c0_i32_0 = arith.constant 0 : i32
    return %arg0, %c0_i32 : i32, i32
  }
  func.func @transform_3(%arg0: i32, %arg1: i32) -> (i32, i32) {
    %c0_i32 = arith.constant 0 : i32
    %c0_i32_0 = arith.constant 0 : i32
    %c0_i32_1 = arith.constant 0 : i32
    return %c0_i32, %c0_i32_0 : i32, i32
  }
  func.func @transform_4(%arg0: i32, %arg1: i32) -> (i32, i32) {
    %c0_i32 = arith.constant 0 : i32
    %c0_i32_0 = arith.constant 0 : i32
    %c0_i32_1 = arith.constant 0 : i32
    return %c0_i32, %c0_i32_0 : i32, i32
  }
}

</mosaic_0001>

<llo_original>
// kernel: tpu_custom_call.1
$region0: #{tpu_custom_call.1}
  #allocation0 [shape = 'u32[]', space=smem, size = 0x4, offset = 0x4, fixed_abs, tag = 'smem constant byte address 0x4 - core index']
  #allocation1 [shape = 'u32[72,128]{1,0:T(1,128)}', space=vmem, size = 0x9000, scoped, tag = 'internal scratch']
  %s0 = inlined_call_operand.hbm [shape: bf16[512,128], index: 0, kind: input, shape index: {}]
  %s1 = inlined_call_operand.hbm [shape: bf16[128,128], index: 1, kind: input, shape index: {}]
  %s2 = inlined_call_operand.hbm [shape: f32[512,128], index: 2, kind: output, shape index: {0}]
  %s3 = inlined_call_operand.hbm [shape: f32[1,128], index: 3, kind: output, shape index: {1}]
  %s4 = inlined_call_operand.hbm [shape: f32[1,128], index: 4, kind: output, shape index: {2}]
  %5 = xla_tuple %s2, %s3, %s4
  %s6 = sld [smem:[#allocation0]]
  $region81: #{tpu_custom_call.1} parent=0
    _
  %s8 = ssub.s32 1, %s6
  %s9 = scalar_select 0, %s8, %s6
  $region1: #{tpu_custom_call.1} parent=0
    #allocation2 [shape = 'u8[65536]{0}', space=vmem, size = 0x10000, scoped, tag = 'input window, operand 0']
    #allocation3 [shape = 's32[2]{0}', space=sflag, size = 0x8, scoped, tag = 'scoped memory for tpu_custom_call.1']
    #allocation4 [shape = 's32[2]{0}', space=sflag, size = 0x8, scoped, tag = 'scoped memory for tpu_custom_call.1']
    #allocation5 [shape = 'u8[32768]{0}', space=vmem, size = 0x8000, scoped, tag = 'input window, operand 1, single buffered']
    #allocation6 [shape = 's32[1]{0}', space=sflag, size = 0x4, scoped, tag = 'scoped memory for tpu_custom_call.1']
    #allocation7 [shape = 'u8[131072]{0}', space=vmem, size = 0x20000, scoped, tag = 'output window, operand 0']
    #allocation8 [shape = 'u8[512]{0}', space=vmem, size = 0x400, scoped, tag = 'output window, operand 1, single buffered']
    #allocation9 [shape = 's32[1]{0}', space=sflag, size = 0x4, scoped, tag = 'scoped memory for tpu_custom_call.1']
    #allocation10 [shape = 'u8[512]{0}', space=vmem, size = 0x400, scoped, tag = 'output window, operand 2, single buffered']
    %10 = vsyncpa [#allocation3], 0
    %s11 = scalar_lea.sflag [#allocation3], 1
    %12 = vsyncpa %s11, 0
    %13 = vsyncpa [#allocation6], 0
    %14 = vsyncpa [#allocation4], 0
    %s15 = scalar_lea.sflag [#allocation4], 1
    %16 = vsyncpa %s15, 0
    %17 = vsyncpa [#allocation9], 0
    loop: start=0, step=1, limit=6
    $region2: #{tpu_custom_call.1} parent=1 // loop_pre_header
      _
    $region3: #{tpu_custom_call.1} parent=1 // loop_header
      %s19 = sphi 0, %s23
      %p20 = scmp.ge.s32.totalorder %s19, 6
      %s26 = sphi 0, %s38
      %s27 = sphi 0, %s34
      %s28 = sphi 0, %s26
      %s29 = sphi 0, %s27
      %s30 = sphi 0, %s28
      %s31 = sphi 0, %s29
      %s43 = sphi 0, %s45
      %s46 = sphi 0, %s43
      %s47 = sphi 0, %s46
      %s63 = sphi 0, %s47
      %s69 = sphi 0, %s71
      %s72 = sphi 0, %s69
      %s73 = sphi 0, %s72
      %s89 = sphi 0, %s73
      %s95 = sphi 0, %s97
      %s98 = sphi 0, %s95
      %s99 = sphi 0, %s98
      %s115 = sphi 0, %s99
      %s119 = sphi 0, %s119
      %s121 = sphi 0, %s119
      %s122 = sphi 0, %s121
      %s136 = sphi 0, %s122
      %s140 = sphi 0, %s140
      %s142 = sphi 0, %s140
      %s143 = sphi 0, %s142
      %s157 = sphi 0, %s143
    $region4: #{tpu_custom_call.1} parent=1 // loop_header_branch
      %22 = sbr.rel (%p20) target = $region8
    $region5: #{tpu_custom_call.1} parent=1 // loop_body
      %s24 = ssub.s32 %s19, 1
      %s25 = ssub.s32 %s19, 2
      %s32 = sadd.s32 1, %s27
      %p33 = scmp.ge.s32.totalorder %s32, 1
      %s34 = scalar_select %p33, 0, %s32
      %s35 = sadd.s32 1, %s26
      %s36 = scalar_select %p33, %s35, %s26
      %p37 = scmp.ge.s32.totalorder %s36, 4
      %s38 = scalar_select %p37, 0, %s36
      %s39 = ssub.s32 %s26, %s38
      %s40 = ssub.s32 %s27, %s34
      %s41 = sor.u32 %s39, %s40
      %p42 = scmp.eq.s32.totalorder %s41, 0
      %s44 = sadd.s32 %s43, 1
      %s45 = scalar_select %p42, %s43, %s44
      %p48 = pneg %p42
      %p49 = scmp.eq.s32.totalorder %s19, 3
      %p50 = por %p48, %p49
      %p51 = scmp.ne.s32.totalorder %s43, %s46
      %p52 = scmp.eq.s32.totalorder %s19, 0
      %p53 = por %p51, %p52
      %p54 = scmp.ne.s32.totalorder %s43, %s46
      %p55 = scmp.eq.s32.totalorder %s24, 3
      %p56 = por %p54, %p55
      %p57 = scmp.ne.s32.totalorder %s46, %s47
      %p58 = scmp.eq.s32.totalorder %s24, 0
      %p59 = por %p57, %p58
      %p60 = scmp.ne.s32.totalorder %s46, %s47
      %p61 = scmp.eq.s32.totalorder %s25, 3
      %p62 = por %p60, %p61
      %p64 = scmp.ne.s32.totalorder %s47, %s63
      %p65 = scmp.eq.s32.totalorder %s25, 0
      %p66 = por %p64, %p65
      %s67 = ssub.s32 %s27, %s34
      %p68 = scmp.eq.s32.totalorder %s67, 0
      %s70 = sadd.s32 %s69, 1
      %s71 = scalar_select %p68, %s69, %s70
      %p74 = pneg %p68
      %p75 = scmp.eq.s32.totalorder %s19, 3
      %p76 = por %p74, %p75
      %p77 = scmp.ne.s32.totalorder %s69, %s72
      %p78 = scmp.eq.s32.totalorder %s19, 0
      %p79 = por %p77, %p78
      %p80 = scmp.ne.s32.totalorder %s69, %s72
      %p81 = scmp.eq.s32.totalorder %s24, 3
      %p82 = por %p80, %p81
      %p83 = scmp.ne.s32.totalorder %s72, %s73
      %p84 = scmp.eq.s32.totalorder %s24, 0
      %p85 = por %p83, %p84
      %p86 = scmp.ne.s32.totalorder %s72, %s73
      %p87 = scmp.eq.s32.totalorder %s25, 3
      %p88 = por %p86, %p87
      %p90 = scmp.ne.s32.totalorder %s73, %s89
      %p91 = scmp.eq.s32.totalorder %s25, 0
      %p92 = por %p90, %p91
      %s93 = ssub.s32 %s26, %s38
      %p94 = scmp.eq.s32.totalorder %s93, 0
      %s96 = sadd.s32 %s95, 1
      %s97 = scalar_select %p94, %s95, %s96
      %p100 = pneg %p94
      %p101 = scmp.eq.s32.totalorder %s19, 3
      %p102 = por %p100, %p101
      %p103 = scmp.ne.s32.totalorder %s95, %s98
      %p104 = scmp.eq.s32.totalorder %s19, 0
      %p105 = por %p103, %p104
      %p106 = scmp.ne.s32.totalorder %s95, %s98
      %p107 = scmp.eq.s32.totalorder %s24, 3
      %p108 = por %p106, %p107
      %p109 = scmp.ne.s32.totalorder %s98, %s99
      %p110 = scmp.eq.s32.totalorder %s24, 0
      %p111 = por %p109, %p110
      %p112 = scmp.ne.s32.totalorder %s98, %s99
      %p113 = scmp.eq.s32.totalorder %s25, 3
      %p114 = por %p112, %p113
      %p116 = scmp.ne.s32.totalorder %s99, %s115
      %p117 = scmp.eq.s32.totalorder %s25, 0
      %p118 = por %p116, %p117
      %s120 = sadd.s32 %s119, 1
      %p123 = scmp.eq.s32.totalorder %s19, 3
      %p124 = scmp.ne.s32.totalorder %s119, %s121
      %p125 = scmp.eq.s32.totalorder %s19, 0
      %p126 = por %p124, %p125
      %p127 = scmp.ne.s32.totalorder %s119, %s121
      %p128 = scmp.eq.s32.totalorder %s24, 3
      %p129 = por %p127, %p128
      %p130 = scmp.ne.s32.totalorder %s121, %s122
      %p131 = scmp.eq.s32.totalorder %s24, 0
      %p132 = por %p130, %p131
      %p133 = scmp.ne.s32.totalorder %s121, %s122
      %p134 = scmp.eq.s32.totalorder %s25, 3
      %p135 = por %p133, %p134
      %p137 = scmp.ne.s32.totalorder %s122, %s136
      %p138 = scmp.eq.s32.totalorder %s25, 0
      %p139 = por %p137, %p138
      %s141 = sadd.s32 %s140, 1
      %p144 = scmp.eq.s32.totalorder %s19, 3
      %p145 = scmp.ne.s32.totalorder %s140, %s142
      %p146 = scmp.eq.s32.totalorder %s19, 0
      %p147 = por %p145, %p146
      %p148 = scmp.ne.s32.totalorder %s140, %s142
      %p149 = scmp.eq.s32.totalorder %s24, 3
      %p150 = por %p148, %p149
      %p151 = scmp.ne.s32.totalorder %s142, %s143
      %p152 = scmp.eq.s32.totalorder %s24, 0
      %p153 = por %p151, %p152
      %p154 = scmp.ne.s32.totalorder %s142, %s143
      %p155 = scmp.eq.s32.totalorder %s25, 3
      %p156 = por %p154, %p155
      %p158 = scmp.ne.s32.totalorder %s143, %s157
      %p159 = scmp.eq.s32.totalorder %s25, 0
      %p160 = por %p158, %p159
      %p161 = scmp.le.s32.totalorder 1, %s19
      %p162 = scmp.lt.s32.totalorder %s19, 5
      %p163 = pnand %p161, %p162
      %p164 = pneg %p163
      // Predicated region
      $region9: #{tpu_custom_call.1} parent=5 // pred_check
        _
      $region10: #{tpu_custom_call.1} parent=5 // pred_check_branch
        %166 = sbr.rel (%p163) target = $region12
      $region11: #{tpu_custom_call.1} parent=5 // pred_region
        %s167 = ssub.s32 %s19, 1
        // Predicated region
        $region13: #{tpu_custom_call.1} parent=11 // pred_check
          %p168 = pneg %p85
        $region14: #{tpu_custom_call.1} parent=11 // pred_check_branch
          %170 = sbr.rel (%p168) target = $region16
        $region15: #{tpu_custom_call.1} parent=11 // pred_region
          %s171 = smul.u32 16, %s29
          %173 = vsyncadd [#allocation6], 0
          %s174 = smul.addr %s171, 4
          %s175 = scalar_lea.hbm %s1, %s174
          %s176 = sshll.u32 %s175, 4
          %s177 = int_to_ptr.hbm [resolvable:$true] %s176
          %s178 = sshll.u32 [#allocation5], 4
          %s179 = int_to_ptr.vmem [resolvable:$true] %s178
          %184 = dma.hbm_to_vmem [thread:$0]  %s177, 1024, %s179, [#allocation6], 64, 64, 4
        $region16: #{tpu_custom_call.1} parent=11 // pred_fallthru
          _
      $region12: #{tpu_custom_call.1} parent=5 // pred_fallthru
        _
      %p185 = scmp.lt.s32.totalorder %s19, 4
      // Predicated region
      $region17: #{tpu_custom_call.1} parent=5 // pred_check
        %p186 = pneg %p185
      $region18: #{tpu_custom_call.1} parent=5 // pred_check_branch
        %188 = sbr.rel (%p186) target = $region20
      $region19: #{tpu_custom_call.1} parent=5 // pred_region
        // Predicated region
        $region21: #{tpu_custom_call.1} parent=19 // pred_check
          %p189 = pneg %p53
        $region22: #{tpu_custom_call.1} parent=19 // pred_check_branch
          %191 = sbr.rel (%p189) target = $region24
        $region23: #{tpu_custom_call.1} parent=19 // pred_region
          %s192 = sand.u32 %s43, 1
          %s193 = scalar_lea.sflag [#allocation3], %s192
          %s194 = sand.u32 %s43, 1
          %s195 = smul.addr %s194, 64
          %s196 = scalar_lea.vmem [#allocation2], %s195
          %s197 = smul.u32 16, %s26
          %199 = vsyncadd %s193, 0
          %s200 = sadd.s32 %s27, %s197
          %s201 = smul.addr %s200, 4
          %s202 = scalar_lea.hbm %s0, %s201
          %s203 = sshll.u32 %s202, 4
          %s204 = int_to_ptr.hbm [resolvable:$true] %s203
          %s205 = sshll.u32 %s196, 4
          %s206 = int_to_ptr.vmem [resolvable:$true] %s205
          %211 = dma.hbm_to_vmem [thread:$0]  %s204, 1024, %s206, %s193, 64, 64, 4
        $region24: #{tpu_custom_call.1} parent=19 // pred_fallthru
          _
      $region20: #{tpu_custom_call.1} parent=5 // pred_fallthru
        _
      %p212 = scmp.le.s32.totalorder 1, %s19
      %p213 = scmp.lt.s32.totalorder %s19, 5
      %p214 = pnand %p212, %p213
      %p215 = pneg %p214
      // Predicated region
      $region25: #{tpu_custom_call.1} parent=5 // pred_check
        _
      $region26: #{tpu_custom_call.1} parent=5 // pred_check_branch
        %217 = sbr.rel (%p214) target = $region28
      $region27: #{tpu_custom_call.1} parent=5 // pred_region
        %s218 = ssub.s32 %s19, 1
        %s219 = sand.u32 %s46, 1
        %s220 = scalar_lea.sflag [#allocation3], %s219
        %s221 = sand.u32 %s46, 1
        %s222 = smul.addr %s221, 64
        %s223 = scalar_lea.vmem [#allocation2], %s222
        // Predicated region
        $region29: #{tpu_custom_call.1} parent=27 // pred_check
          %p224 = pneg %p59
        $region30: #{tpu_custom_call.1} parent=27 // pred_check_branch
          %226 = sbr.rel (%p224) target = $region32
        $region31: #{tpu_custom_call.1} parent=27 // pred_region
          %228 = dma.done %s220, 1024
        $region32: #{tpu_custom_call.1} parent=27 // pred_fallthru
          _
        // Predicated region
        $region33: #{tpu_custom_call.1} parent=27 // pred_check
          %p229 = pneg %p85
        $region34: #{tpu_custom_call.1} parent=27 // pred_check_branch
          %231 = sbr.rel (%p229) target = $region36
        $region35: #{tpu_custom_call.1} parent=27 // pred_region
          %233 = dma.done [#allocation6], 1024
        $region36: #{tpu_custom_call.1} parent=27 // pred_fallthru
          _
        %s234 = sand.u32 %s46, 1
        %s235 = scalar_lea.sflag [#allocation3], %s234
        %s236 = sand.u32 %s46, 1
        %s237 = smul.addr %s236, 64
        %s238 = scalar_lea.vmem [#allocation2], %s237
        %p239 = pneg %p59
        %p240 = pneg %p56
        %p241 = pneg %p85
        %p242 = pneg %p82
        %p243 = pneg %p111
        %p244 = pneg %p108
        %s245 = sand.u32 %s98, 1
        %s246 = scalar_lea.sflag [#allocation4], %s245
        %s247 = sand.u32 %s98, 1
        %s248 = smul.addr %s247, 128
        %s249 = scalar_lea.vmem [#allocation7], %s248
        %p250 = pneg %p132
        %p251 = pneg %p129
        %p252 = pneg %p153
        %p253 = pneg %p150
        %s254 = smul.u32 16, %s28
        %s255 = smul.u32 16, %s29
        %s256 = smul.u32 16, %s28
        %p257 = scmp.eq.s32.totalorder %s29, 0
        // Predicated region
        $region37: #{tpu_custom_call.1} parent=27 // pred_check
          %p258 = pneg %p257
        $region38: #{tpu_custom_call.1} parent=27 // pred_check_branch
          %260 = sbr.rel (%p258) target = $region40
        $region39: #{tpu_custom_call.1} parent=27 // pred_region
          %261 = vst [vmem:[%s249] sm:$0xff] 0.0
          %262 = vst [vmem:[%s249 + $0x8] sm:$0xff] 0.0
          %263 = vst [vmem:[%s249 + $0x10] sm:$0xff] 0.0
          %264 = vst [vmem:[%s249 + $0x18] sm:$0xff] 0.0
          %265 = vst [vmem:[%s249 + $0x20] sm:$0xff] 0.0
          %266 = vst [vmem:[%s249 + $0x28] sm:$0xff] 0.0
          %267 = vst [vmem:[%s249 + $0x30] sm:$0xff] 0.0
          %268 = vst [vmem:[%s249 + $0x38] sm:$0xff] 0.0
          %269 = vst [vmem:[%s249 + $0x40] sm:$0xff] 0.0
          %270 = vst [vmem:[%s249 + $0x48] sm:$0xff] 0.0
          %271 = vst [vmem:[%s249 + $0x50] sm:$0xff] 0.0
          %272 = vst [vmem:[%s249 + $0x58] sm:$0xff] 0.0
          %273 = vst [vmem:[%s249 + $0x60] sm:$0xff] 0.0
          %274 = vst [vmem:[%s249 + $0x68] sm:$0xff] 0.0
          %275 = vst [vmem:[%s249 + $0x70] sm:$0xff] 0.0
          %276 = vst [vmem:[%s249 + $0x78] sm:$0xff] 0.0
        $region40: #{tpu_custom_call.1} parent=27 // pred_fallthru
          _
        %v277 = vld [vmem:[%s249] sm:$0xff]
        %v278 = vld [vmem:[%s249 + $0x8] sm:$0xff]
        %v279 = vld [vmem:[%s249 + $0x10] sm:$0xff]
        %v280 = vld [vmem:[%s249 + $0x18] sm:$0xff]
        %v281 = vld [vmem:[%s249 + $0x20] sm:$0xff]
        %v282 = vld [vmem:[%s249 + $0x28] sm:$0xff]
        %v283 = vld [vmem:[%s249 + $0x30] sm:$0xff]
        %v284 = vld [vmem:[%s249 + $0x38] sm:$0xff]
        %v285 = vld [vmem:[%s249 + $0x40] sm:$0xff]
        %v286 = vld [vmem:[%s249 + $0x48] sm:$0xff]
        %v287 = vld [vmem:[%s249 + $0x50] sm:$0xff]
        %v288 = vld [vmem:[%s249 + $0x58] sm:$0xff]
        %v289 = vld [vmem:[%s249 + $0x60] sm:$0xff]
        %v290 = vld [vmem:[%s249 + $0x68] sm:$0xff]
        %v291 = vld [vmem:[%s249 + $0x70] sm:$0xff]
        %v292 = vld [vmem:[%s249 + $0x78] sm:$0xff]
        %v293 = vld [vmem:[%s223] sm:$0xf]
        %v294 = vld [vmem:[%s223 + $0x4] sm:$0xf]
        %v295 = vld [vmem:[%s223 + $0x8] sm:$0xf]
        %v296 = vld [vmem:[%s223 + $0xc] sm:$0xf]
        %v297 = vld [vmem:[%s223 + $0x10] sm:$0xf]
        %v298 = vld [vmem:[%s223 + $0x14] sm:$0xf]
        %v299 = vld [vmem:[%s223 + $0x18] sm:$0xf]
        %v300 = vld [vmem:[%s223 + $0x1c] sm:$0xf]
        %v301 = vld [vmem:[%s223 + $0x20] sm:$0xf]
        %v302 = vld [vmem:[%s223 + $0x24] sm:$0xf]
        %v303 = vld [vmem:[%s223 + $0x28] sm:$0xf]
        %v304 = vld [vmem:[%s223 + $0x2c] sm:$0xf]
        %v305 = vld [vmem:[%s223 + $0x30] sm:$0xf]
        %v306 = vld [vmem:[%s223 + $0x34] sm:$0xf]
        %v307 = vld [vmem:[%s223 + $0x38] sm:$0xf]
        %v308 = vld [vmem:[%s223 + $0x3c] sm:$0xf]
        %v309 = vld [vmem:[#allocation5] sm:$0xf]
        %v310 = vld [vmem:[#allocation5 + $0x4] sm:$0xf]
        %v311 = vld [vmem:[#allocation5 + $0x8] sm:$0xf]
        %v312 = vld [vmem:[#allocation5 + $0xc] sm:$0xf]
        %v313 = vld [vmem:[#allocation5 + $0x10] sm:$0xf]
        %v314 = vld [vmem:[#allocation5 + $0x14] sm:$0xf]
        %v315 = vld [vmem:[#allocation5 + $0x18] sm:$0xf]
        %v316 = vld [vmem:[#allocation5 + $0x1c] sm:$0xf]
        %v317 = vld [vmem:[#allocation5 + $0x20] sm:$0xf]
        %v318 = vld [vmem:[#allocation5 + $0x24] sm:$0xf]
        %v319 = vld [vmem:[#allocation5 + $0x28] sm:$0xf]
        %v320 = vld [vmem:[#allocation5 + $0x2c] sm:$0xf]
        %v321 = vld [vmem:[#allocation5 + $0x30] sm:$0xf]
        %v322 = vld [vmem:[#allocation5 + $0x34] sm:$0xf]
        %v323 = vld [vmem:[#allocation5 + $0x38] sm:$0xf]
        %v324 = vld [vmem:[#allocation5 + $0x3c] sm:$0xf]
        %v341 = vunpack.c.l.b16 %v293
        %v342 = vunpack.c.l.b16 %v294
        %v343 = vunpack.c.l.b16 %v295
        %v344 = vunpack.c.l.b16 %v296
        %v345 = vunpack.c.l.b16 %v297
        %v346 = vunpack.c.l.b16 %v298
        %v347 = vunpack.c.l.b16 %v299
        %v348 = vunpack.c.l.b16 %v300
        %v349 = vunpack.c.l.b16 %v301
        %v350 = vunpack.c.l.b16 %v302
        %v351 = vunpack.c.l.b16 %v303
        %v352 = vunpack.c.l.b16 %v304
        %v353 = vunpack.c.l.b16 %v305
        %v354 = vunpack.c.l.b16 %v306
        %v355 = vunpack.c.l.b16 %v307
        %v356 = vunpack.c.l.b16 %v308
        %v357 = vpack.c.b16 %v342, %v341
        %v358 = vpack.c.b16 %v344, %v343
        %v359 = vpack.c.b16 %v346, %v345
        %v360 = vpack.c.b16 %v348, %v347
        %v361 = vpack.c.b16 %v350, %v349
        %v362 = vpack.c.b16 %v352, %v351
        %v363 = vpack.c.b16 %v354, %v353
        %v364 = vpack.c.b16 %v356, %v355
        %v389 = vunpack.c.l.b16 %v309
        %v390 = vunpack.c.l.b16 %v310
        %v391 = vunpack.c.l.b16 %v311
        %v392 = vunpack.c.l.b16 %v312
        %v393 = vunpack.c.l.b16 %v313
        %v394 = vunpack.c.l.b16 %v314
        %v395 = vunpack.c.l.b16 %v315
        %v396 = vunpack.c.l.b16 %v316
        %v397 = vunpack.c.l.b16 %v317
        %v398 = vunpack.c.l.b16 %v318
        %v399 = vunpack.c.l.b16 %v319
        %v400 = vunpack.c.l.b16 %v320
        %v401 = vunpack.c.l.b16 %v321
        %v402 = vunpack.c.l.b16 %v322
        %v403 = vunpack.c.l.b16 %v323
        %v404 = vunpack.c.l.b16 %v324
        %v405 = vpack.c.b16 %v390, %v389
        %v406 = vpack.c.b16 %v392, %v391
        %v407 = vpack.c.b16 %v394, %v393
        %v408 = vpack.c.b16 %v396, %v395
        %v409 = vpack.c.b16 %v398, %v397
        %v410 = vpack.c.b16 %v400, %v399
        %v411 = vpack.c.b16 %v402, %v401
        %v412 = vpack.c.b16 %v404, %v403
        %421 = vmatpush.bf16.msra.mxu0 %v412
        %422 = vmatpush.bf16.msra.mxu0 %v411
        %423 = vmatpush.bf16.msra.mxu0 %v410
        %424 = vmatpush.bf16.msra.mxu0 %v409
        %425 = vmatpush.bf16.msra.mxu0 %v408
        %426 = vmatpush.bf16.msra.mxu0 %v407
        %427 = vmatpush.bf16.msra.mxu0 %v406
        %428 = vmatpush.bf16.msra.mxu0 %v405
        %429 = vmatmul.bf16.gmra.mxu0 %v357
        %v430 = vpop.f32.mrf.mxu0
        %v431 = vadd.f32 0.0, %v430
        %v432 = vpop.f32.mrf.mxu0
        %v433 = vadd.f32 0.0, %v432
        %434 = vmatmul.bf16.gmra.mxu0 %v358
        %v435 = vpop.f32.mrf.mxu0
        %v436 = vadd.f32 0.0, %v435
        %v437 = vpop.f32.mrf.mxu0
        %v438 = vadd.f32 0.0, %v437
        %439 = vmatmul.bf16.gmra.mxu0 %v359
        %v440 = vpop.f32.mrf.mxu0
        %v441 = vadd.f32 0.0, %v440
        %v442 = vpop.f32.mrf.mxu0
        %v443 = vadd.f32 0.0, %v442
        %444 = vmatmul.bf16.gmra.mxu0 %v360
        %v445 = vpop.f32.mrf.mxu0
        %v446 = vadd.f32 0.0, %v445
        %v447 = vpop.f32.mrf.mxu0
        %v448 = vadd.f32 0.0, %v447
        %449 = vmatmul.bf16.gmra.mxu0 %v361
        %v450 = vpop.f32.mrf.mxu0
        %v451 = vadd.f32 0.0, %v450
        %v452 = vpop.f32.mrf.mxu0
        %v453 = vadd.f32 0.0, %v452
        %454 = vmatmul.bf16.gmra.mxu0 %v362
        %v455 = vpop.f32.mrf.mxu0
        %v456 = vadd.f32 0.0, %v455
        %v457 = vpop.f32.mrf.mxu0
        %v458 = vadd.f32 0.0, %v457
        %459 = vmatmul.bf16.gmra.mxu0 %v363
        %v460 = vpop.f32.mrf.mxu0
        %v461 = vadd.f32 0.0, %v460
        %v462 = vpop.f32.mrf.mxu0
        %v463 = vadd.f32 0.0, %v462
        %464 = vmatmul.bf16.gmra.mxu0 %v364
        %v465 = vpop.f32.mrf.mxu0
        %v466 = vadd.f32 0.0, %v465
        %v467 = vpop.f32.mrf.mxu0
        %v468 = vadd.f32 0.0, %v467
        %469 = vdwg.mxu0
        %v470 = vadd.f32 %v277, %v431
        %v471 = vadd.f32 %v278, %v433
        %v472 = vadd.f32 %v279, %v436
        %v473 = vadd.f32 %v280, %v438
        %v474 = vadd.f32 %v281, %v441
        %v475 = vadd.f32 %v282, %v443
        %v476 = vadd.f32 %v283, %v446
        %v477 = vadd.f32 %v284, %v448
        %v478 = vadd.f32 %v285, %v451
        %v479 = vadd.f32 %v286, %v453
        %v480 = vadd.f32 %v287, %v456
        %v481 = vadd.f32 %v288, %v458
        %v482 = vadd.f32 %v289, %v461
        %v483 = vadd.f32 %v290, %v463
        %v484 = vadd.f32 %v291, %v466
        %v485 = vadd.f32 %v292, %v468
        %486 = vst [vmem:[%s249] sm:$0xff] %v470
        %487 = vst [vmem:[%s249 + $0x8] sm:$0xff] %v471
        %488 = vst [vmem:[%s249 + $0x10] sm:$0xff] %v472
        %489 = vst [vmem:[%s249 + $0x18] sm:$0xff] %v473
        %490 = vst [vmem:[%s249 + $0x20] sm:$0xff] %v474
        %491 = vst [vmem:[%s249 + $0x28] sm:$0xff] %v475
        %492 = vst [vmem:[%s249 + $0x30] sm:$0xff] %v476
        %493 = vst [vmem:[%s249 + $0x38] sm:$0xff] %v477
        %494 = vst [vmem:[%s249 + $0x40] sm:$0xff] %v478
        %495 = vst [vmem:[%s249 + $0x48] sm:$0xff] %v479
        %496 = vst [vmem:[%s249 + $0x50] sm:$0xff] %v480
        %497 = vst [vmem:[%s249 + $0x58] sm:$0xff] %v481
        %498 = vst [vmem:[%s249 + $0x60] sm:$0xff] %v482
        %499 = vst [vmem:[%s249 + $0x68] sm:$0xff] %v483
        %500 = vst [vmem:[%s249 + $0x70] sm:$0xff] %v484
        %501 = vst [vmem:[%s249 + $0x78] sm:$0xff] %v485
        // Predicated region
        $region41: #{tpu_custom_call.1} parent=27 // pred_check
          %p502 = pneg %p257
        $region42: #{tpu_custom_call.1} parent=27 // pred_check_branch
          %504 = sbr.rel (%p502) target = $region44
        $region43: #{tpu_custom_call.1} parent=27 // pred_region
          %v505 = vld [vmem:[%s249] sm:$0xff]
          %v506 = vld [vmem:[%s249 + $0x8] sm:$0xff]
          %v507 = vld [vmem:[%s249 + $0x10] sm:$0xff]
          %v508 = vld [vmem:[%s249 + $0x18] sm:$0xff]
          %v509 = vld [vmem:[%s249 + $0x20] sm:$0xff]
          %v510 = vld [vmem:[%s249 + $0x28] sm:$0xff]
          %v511 = vld [vmem:[%s249 + $0x30] sm:$0xff]
          %v512 = vld [vmem:[%s249 + $0x38] sm:$0xff]
          %v513 = vld [vmem:[%s249 + $0x40] sm:$0xff]
          %v514 = vld [vmem:[%s249 + $0x48] sm:$0xff]
          %v515 = vld [vmem:[%s249 + $0x50] sm:$0xff]
          %v516 = vld [vmem:[%s249 + $0x58] sm:$0xff]
          %v517 = vld [vmem:[%s249 + $0x60] sm:$0xff]
          %v518 = vld [vmem:[%s249 + $0x68] sm:$0xff]
          %v519 = vld [vmem:[%s249 + $0x70] sm:$0xff]
          %v520 = vld [vmem:[%s249 + $0x78] sm:$0xff]
          %v521 = vadd.f32 %v505, %v506
          %v522 = vadd.f32 %v521, %v507
          %v523 = vadd.f32 %v522, %v508
          %v524 = vadd.f32 %v523, %v509
          %v525 = vadd.f32 %v524, %v510
          %v526 = vadd.f32 %v525, %v511
          %v527 = vadd.f32 %v526, %v512
          %v528 = vadd.f32 %v527, %v513
          %v529 = vadd.f32 %v528, %v514
          %v530 = vadd.f32 %v529, %v515
          %v531 = vadd.f32 %v530, %v516
          %v532 = vadd.f32 %v531, %v517
          %v533 = vadd.f32 %v532, %v518
          %v534 = vadd.f32 %v533, %v519
          %v535 = vadd.f32 %v534, %v520
          %v536 = vrot.slane %v535, 4
          %v537 = vadd.f32 %v535, %v536
          %v538 = vrot.slane %v537, 2
          %v539 = vadd.f32 %v537, %v538
          %v540 = vrot.slane %v539, 1
          %v541 = vadd.f32 %v539, %v540
          %v542 = vmul.f32 %v505, %v505
          %v543 = vmul.f32 %v506, %v506
          %v544 = vmul.f32 %v507, %v507
          %v545 = vmul.f32 %v508, %v508
          %v546 = vmul.f32 %v509, %v509
          %v547 = vmul.f32 %v510, %v510
          %v548 = vmul.f32 %v511, %v511
          %v549 = vmul.f32 %v512, %v512
          %v550 = vmul.f32 %v513, %v513
          %v551 = vmul.f32 %v514, %v514
          %v552 = vmul.f32 %v515, %v515
          %v553 = vmul.f32 %v516, %v516
          %v554 = vmul.f32 %v517, %v517
          %v555 = vmul.f32 %v518, %v518
          %v556 = vmul.f32 %v519, %v519
          %v557 = vmul.f32 %v520, %v520
          %v558 = vadd.f32 %v542, %v543
          %v559 = vadd.f32 %v558, %v544
          %v560 = vadd.f32 %v559, %v545
          %v561 = vadd.f32 %v560, %v546
          %v562 = vadd.f32 %v561, %v547
          %v563 = vadd.f32 %v562, %v548
          %v564 = vadd.f32 %v563, %v549
          %v565 = vadd.f32 %v564, %v550
          %v566 = vadd.f32 %v565, %v551
          %v567 = vadd.f32 %v566, %v552
          %v568 = vadd.f32 %v567, %v553
          %v569 = vadd.f32 %v568, %v554
          %v570 = vadd.f32 %v569, %v555
          %v571 = vadd.f32 %v570, %v556
          %v572 = vadd.f32 %v571, %v557
          %v573 = vrot.slane %v572, 4
          %v574 = vadd.f32 %v572, %v573
          %v575 = vrot.slane %v574, 2
          %v576 = vadd.f32 %v574, %v575
          %v577 = vrot.slane %v576, 1
          %v578 = vadd.f32 %v576, %v577
          %p579 = scmp.eq.s32.totalorder %s28, 0
          // Predicated region
          $region45: #{tpu_custom_call.1} parent=43 // pred_check
            %p580 = pneg %p579
          $region46: #{tpu_custom_call.1} parent=43 // pred_check_branch
            %582 = sbr.rel (%p580) target = $region48
          $region47: #{tpu_custom_call.1} parent=43 // pred_region
            %583 = vst [vmem:[#allocation8] sm:$0x1] %v541
            %584 = vst [vmem:[#allocation10] sm:$0x1] %v578
          $region48: #{tpu_custom_call.1} parent=43 // pred_fallthru
            _
          %p585 = scmp.gt.s32.totalorder %s28, 0
          // Predicated region
          $region49: #{tpu_custom_call.1} parent=43 // pred_check
            %p586 = pneg %p585
          $region50: #{tpu_custom_call.1} parent=43 // pred_check_branch
            %588 = sbr.rel (%p586) target = $region52
          $region51: #{tpu_custom_call.1} parent=43 // pred_region
            %v589 = vld [vmem:[#allocation8] sm:$0x1]
            %v590 = vadd.f32 %v589, %v541
            %591 = vst [vmem:[#allocation8] sm:$0x1] %v590
            %v592 = vld [vmem:[#allocation10] sm:$0x1]
            %v593 = vadd.f32 %v592, %v578
            %594 = vst [vmem:[#allocation10] sm:$0x1] %v593
          $region52: #{tpu_custom_call.1} parent=43 // pred_fallthru
            _
        $region44: #{tpu_custom_call.1} parent=27 // pred_fallthru
          _
        %s595 = sand.u32 %s98, 1
        %s596 = scalar_lea.sflag [#allocation4], %s595
        %s597 = sand.u32 %s98, 1
        %s598 = smul.addr %s597, 128
        %s599 = scalar_lea.vmem [#allocation7], %s598
        // Predicated region
        $region53: #{tpu_custom_call.1} parent=27 // pred_check
          %p600 = pneg %p108
        $region54: #{tpu_custom_call.1} parent=27 // pred_check_branch
          %602 = sbr.rel (%p600) target = $region56
        $region55: #{tpu_custom_call.1} parent=27 // pred_region
          %s603 = smul.u32 16, %s28
          %605 = vsyncadd %s596, 0
          %s606 = smul.addr %s603, 8
          %s607 = scalar_lea.hbm %s2, %s606
          %s608 = sshll.u32 %s599, 4
          %s609 = int_to_ptr.vmem [resolvable:$true] %s608
          %s610 = sshll.u32 %s607, 4
          %s611 = int_to_ptr.hbm [resolvable:$true] %s610
          %616 = dma.vmem_to_hbm [thread:$0]  %s609, 2048, %s611, %s596, 128, 128, 8
        $region56: #{tpu_custom_call.1} parent=27 // pred_fallthru
          _
        // Predicated region
        $region57: #{tpu_custom_call.1} parent=27 // pred_check
          %p617 = pneg %p129
        $region58: #{tpu_custom_call.1} parent=27 // pred_check_branch
          %619 = sbr.rel (%p617) target = $region60
        $region59: #{tpu_custom_call.1} parent=27 // pred_region
          %621 = vsyncadd [#allocation9], 0
          %s623 = sshll.u32 [#allocation8], 4
          %s624 = int_to_ptr.vmem [resolvable:$true] %s623
          %s625 = sshll.u32 %s3, 4
          %s626 = int_to_ptr.hbm [resolvable:$true] %s625
          %628 = dma.vmem_to_hbm [thread:$0]  %s624, 16, %s626, [#allocation9]
        $region60: #{tpu_custom_call.1} parent=27 // pred_fallthru
          _
        // Predicated region
        $region61: #{tpu_custom_call.1} parent=27 // pred_check
          %p629 = pneg %p150
        $region62: #{tpu_custom_call.1} parent=27 // pred_check_branch
          %631 = sbr.rel (%p629) target = $region64
        $region63: #{tpu_custom_call.1} parent=27 // pred_region
          %633 = vsyncadd [#allocation9], 0
          %s635 = sshll.u32 [#allocation10], 4
          %s636 = int_to_ptr.vmem [resolvable:$true] %s635
          %s637 = sshll.u32 %s4, 4
          %s638 = int_to_ptr.hbm [resolvable:$true] %s637
          %640 = dma.vmem_to_hbm [thread:$0]  %s636, 16, %s638, [#allocation9]
        $region64: #{tpu_custom_call.1} parent=27 // pred_fallthru
          _
        // Predicated region
        $region65: #{tpu_custom_call.1} parent=27 // pred_check
          %p641 = pneg %p129
        $region66: #{tpu_custom_call.1} parent=27 // pred_check_branch
          %643 = sbr.rel (%p641) target = $region68
        $region67: #{tpu_custom_call.1} parent=27 // pred_region
          %645 = dma.done [#allocation9], 16
        $region68: #{tpu_custom_call.1} parent=27 // pred_fallthru
          _
        // Predicated region
        $region69: #{tpu_custom_call.1} parent=27 // pred_check
          %p646 = pneg %p150
        $region70: #{tpu_custom_call.1} parent=27 // pred_check_branch
          %648 = sbr.rel (%p646) target = $region72
        $region71: #{tpu_custom_call.1} parent=27 // pred_region
          %650 = dma.done [#allocation9], 16
        $region72: #{tpu_custom_call.1} parent=27 // pred_fallthru
          _
      $region28: #{tpu_custom_call.1} parent=5 // pred_fallthru
        _
      %p651 = scmp.le.s32.totalorder 2, %s19
      // Predicated region
      $region73: #{tpu_custom_call.1} parent=5 // pred_check
        %p652 = pneg %p651
      $region74: #{tpu_custom_call.1} parent=5 // pred_check_branch
        %654 = sbr.rel (%p652) target = $region76
      $region75: #{tpu_custom_call.1} parent=5 // pred_region
        %s655 = ssub.s32 %s19, 2
        // Predicated region
        $region77: #{tpu_custom_call.1} parent=75 // pred_check
          %p656 = pneg %p114
        $region78: #{tpu_custom_call.1} parent=75 // pred_check_branch
          %658 = sbr.rel (%p656) target = $region80
        $region79: #{tpu_custom_call.1} parent=75 // pred_region
          %s659 = sand.u32 %s99, 1
          %s660 = scalar_lea.sflag [#allocation4], %s659
          %s661 = sand.u32 %s99, 1
          %s662 = smul.addr %s661, 128
          %s663 = scalar_lea.vmem [#allocation7], %s662
          %665 = dma.done %s660, 2048
        $region80: #{tpu_custom_call.1} parent=75 // pred_fallthru
          _
      $region76: #{tpu_custom_call.1} parent=5 // pred_fallthru
        _
    $region6: #{tpu_custom_call.1} parent=1 // loop_footer
      %s23 = sadd.s32 1, %s19
    $region7: #{tpu_custom_call.1} parent=1 // loop_footer_branch
      %18 = sbr.rel target = $region3
    $region8: #{tpu_custom_call.1} parent=1 // loop_exit
      _
    %666 = vsyncpa [#allocation3], 1
    %s667 = scalar_lea.sflag [#allocation3], 1
    %668 = vsyncpa %s667, 1
    %669 = vsyncpa [#allocation6], 1
    %670 = vsyncpa [#allocation4], 1
    %s671 = scalar_lea.sflag [#allocation4], 1
    %672 = vsyncpa %s671, 1
    %673 = vsyncpa [#allocation9], 1

</llo_original>
